<compile_context>
chip_gen: v5e
topology: v5e:2x2
jax: 0.10.0
libtpu: 0.0.40
codegen_flags: <defaults>
</compile_context>

<pallas_src>
import functools

import jax
import jax.numpy as jnp
from jax.experimental import pallas as pl
from jax.experimental.pallas import tpu as pltpu

NUM_LOCATION = 58
NUM_AGE = 2
EMBEDDING_SIZE = 16          # args.embedding_size
_BLOCK_ROWS = 64             # 58 + 2 rounded up to a sublane multiple (one gather block)
_PACK = 4                    # batch rows packed per lane-dense output row (4*2E = 128 lanes)
_MIN_PALLAS_BATCH = 1024     # below this, XLA gather+concat beats kernel launch overhead


def _round_up(x, m):
    return (x + m - 1) // m * m


def user_kernel(idx_ref, table_ref, out_ref):
    """idx_ref:   [tb4, 8]  int32 pre-offset packed indices
                  cols 0..3: loc[4r+s] + 64*s ; cols 4..7: 58 + age[4r+s] + 64*s
       table_ref: [4*64, 4*2E] block-diagonal packed embedding slab (VMEM-resident)
       out_ref:   [tb4, 4*2E]  lane-dense output (4 batch rows per row)."""
    idx = idx_ref[...]
    tb4 = idx.shape[0]
    k_dim = table_ref.shape[0]
    col = jax.lax.broadcasted_iota(jnp.int32, (tb4, k_dim), 1)
    hit = col == idx[:, 0:1]
    for k in range(1, 2 * _PACK):
        hit = jnp.logical_or(hit, col == idx[:, k:k + 1])
    onehot = hit.astype(jnp.float32)
    # Block-diagonal table => one MXU matmul performs both embedding gathers AND
    # the dim=1 concat for 4 batch rows per output row (exact in f32).
    out_ref[...] = jnp.dot(onehot, table_ref[...],
                           preferred_element_type=jnp.float32)


def init_params(key, emb=EMBEDDING_SIZE):
    k_loc, k_age = jax.random.split(key)
    # nn.Embedding default init: N(0, 1)
    loc = jax.random.normal(k_loc, (NUM_LOCATION, emb), jnp.float32)
    age = jax.random.normal(k_age, (NUM_AGE, emb), jnp.float32)
    two_e = 2 * emb
    # 4-way block-diagonal packed slab: for emb=16 this is [256, 128] (128 KiB).
    table = jnp.zeros((_PACK * _BLOCK_ROWS, _PACK * two_e), jnp.float32)
    for s in range(_PACK):
        r0 = s * _BLOCK_ROWS
        c0 = s * two_e
        table = table.at[r0:r0 + NUM_LOCATION, c0:c0 + emb].set(loc)
        table = table.at[r0 + NUM_LOCATION:r0 + NUM_LOCATION + NUM_AGE,
                         c0 + emb:c0 + two_e].set(age)
    return {"location_emb": loc, "age_emb": age, "packed_table": table}


@functools.partial(jax.jit, static_argnames=("block_b", "use_pallas"))
def user_forward(params, location_idx, age_idx, *, block_b=4096, use_pallas=None):
    """Equivalent of user.forward: cat((location_emb(loc), age_emb(age)), dim=1) -> [B, 2E].
    NOTE: like nn.Embedding, out-of-range indices are undefined (no bounds check)."""
    B = location_idx.shape[0]
    emb = params["location_emb"].shape[1]
    two_e = 2 * emb

    if use_pallas is None:
        use_pallas = B >= _MIN_PALLAS_BATCH
    if not use_pallas:
        # Tiny batches: plain XLA gather + concat (launch overhead dominates otherwise).
        return jnp.concatenate(
            [jnp.take(params["location_emb"], location_idx, axis=0),
             jnp.take(params["age_emb"], age_idx, axis=0)], axis=1)

    table = params["packed_table"]                       # [4*64, 4*2E]

    # Batch tile: multiple of 32 rows (8 sublanes x 4 packed rows) => pad <= 31 rows.
    bb = max(32, _round_up(int(block_b), 32))
    grid_n = pl.cdiv(B, bb)
    if grid_n == 1 and B >= _MIN_PALLAS_BATCH:
        grid_n = 2                                        # v7x: give both TensorCores a step
    tb = _round_up(pl.cdiv(B, grid_n), 32)
    bp = tb * grid_n
    tb4 = tb // _PACK

    loc = location_idx.astype(jnp.int32)
    age = age_idx.astype(jnp.int32) + NUM_LOCATION        # pre-offset into age rows
    if bp != B:
        pad = bp - B
        loc = jnp.pad(loc, (0, pad))                                   # -> location row 0
        age = jnp.pad(age, (0, pad), constant_values=NUM_LOCATION)     # -> age row 0
    slot = jnp.arange(_PACK, dtype=jnp.int32) * _BLOCK_ROWS            # [0, 64, 128, 192]
    idx = jnp.concatenate(
        [loc.reshape(bp // _PACK, _PACK) + slot,
         age.reshape(bp // _PACK, _PACK) + slot], axis=1)              # [bp/4, 8] int32

    out = pl.pallas_call(
        user_kernel,
        out_shape=jax.ShapeDtypeStruct((bp // _PACK, _PACK * two_e), jnp.float32),
        grid_spec=pltpu.PrefetchScalarGridSpec(
            num_scalar_prefetch=0,
            grid=(grid_n,),
            in_specs=[
                pl.BlockSpec((tb4, 2 * _PACK), lambda i: (i, 0)),       # packed indices tile
                pl.BlockSpec(table.shape, lambda i: (0, 0)),            # table: VMEM-resident
            ],
            out_specs=pl.BlockSpec((tb4, _PACK * two_e), lambda i: (i, 0)),
        ),
        compiler_params=pltpu.CompilerParams(
            dimension_semantics=("parallel",)),            # shards batch across v7x's 2 TCs
    )(idx, table)

    out = out.reshape(bp, two_e)        # free row-major reshape: unpack 4 rows per lane-row
    if bp != B:
        out = out[:B]                   # only when B is not a multiple of 32 (<= 31 rows)
    return out


def user_ref(params, location_idx, age_idx):
    """Pure-JAX reference of the PyTorch forward."""
    return jnp.concatenate(
        [jnp.take(params["location_emb"], location_idx, axis=0),
         jnp.take(params["age_emb"], age_idx, axis=0)], axis=1)


if __name__ == "__main__":
    key = jax.random.PRNGKey(0)
    k_params, k1, k2, k3, k4 = jax.random.split(key, 5)
    params = init_params(k_params)

    # Small batch, Pallas path forced (exercises <=31-row padding + epilogue slice).
    B1 = 8
    loc1 = jax.random.randint(k1, (B1,), 0, NUM_LOCATION, dtype=jnp.int32)
    age1 = jax.random.randint(k2, (B1,), 0, NUM_AGE, dtype=jnp.int32)
    out1 = user_forward(params, loc1, age1, use_pallas=True)
    jax.block_until_ready(out1)
    ref1 = user_ref(params, loc1, age1)
    assert out1.shape == (B1, 2 * EMBEDDING_SIZE), out1.shape
    assert jnp.allclose(out1, ref1, atol=1e-6), float(jnp.max(jnp.abs(out1 - ref1)))

    # Awkward batch (not a multiple of 32), Pallas path forced.
    B2 = 100
    loc2 = jax.random.randint(k3, (B2,), 0, NUM_LOCATION, dtype=jnp.int32)
    age2 = jax.random.randint(k4, (B2,), 0, NUM_AGE, dtype=jnp.int32)
    out2 = user_forward(params, loc2, age2, use_pallas=True)
    jax.block_until_ready(out2)
    ref2 = user_ref(params, loc2, age2)
    assert out2.shape == (B2, 2 * EMBEDDING_SIZE), out2.shape
    assert jnp.allclose(out2, ref2, atol=1e-6), float(jnp.max(jnp.abs(out2 - ref2)))

    # Auto dispatch: small batch takes the XLA fallback; large batch takes the
    # 2-step (no-pad, no-slice) Pallas path.
    out3 = user_forward(params, loc1, age1)              # fallback path
    jax.block_until_ready(out3)
    assert jnp.allclose(out3, ref1, atol=1e-6)

    B4 = 1024
    loc4 = jnp.arange(B4, dtype=jnp.int32) % NUM_LOCATION
    age4 = jnp.arange(B4, dtype=jnp.int32) % NUM_AGE
    out4 = user_forward(params, loc4, age4)              # pallas, grid=2, bp == B
    jax.block_until_ready(out4)
    ref4 = user_ref(params, loc4, age4)
    assert out4.shape == (B4, 2 * EMBEDDING_SIZE), out4.shape
    assert jnp.allclose(out4, ref4, atol=1e-6), float(jnp.max(jnp.abs(out4 - ref4)))

    print("KERNEL_OK")
</pallas_src>

<mosaic_0001>
module attributes {stable_mosaic.version = 11 : i64} {
  func.func @user_kernel(%arg0: i32, %arg1: memref<8x8xi32, #tpu.memory_space<vmem>>, %arg2: memref<256x128xf32, #tpu.memory_space<vmem>>, %arg3: memref<8x128xf32, #tpu.memory_space<vmem>>) attributes {dimension_semantics = [#tpu.dimension_semantics<parallel>], iteration_bounds = array<i64: 1>, scalar_prefetch = 0 : i64, scratch_operands = 0 : i64, tpu.core_type = #tpu.core_type<tc>, window_params = [{transform_indices = @transform_0, window_bounds = array<i64: 8, 8>}, {pipeline_mode = #tpu.pipeline_mode<synchronous>, transform_indices = @transform_1, window_bounds = array<i64: 256, 128>}, {transform_indices = @transform_2, window_bounds = array<i64: 8, 128>}]} {
    %c0 = arith.constant 0 : index
    %c0_0 = arith.constant 0 : index
    %0 = vector.load %arg1[%c0, %c0_0] : memref<8x8xi32, #tpu.memory_space<vmem>>, vector<8x8xi32>
    %1 = tpu.iota {dimensions = array<i32: 1>} : vector<8x256xi32>
    %2 = vector.extract_strided_slice %0 {offsets = [0, 0], sizes = [8, 1], strides = [1, 1]} : vector<8x8xi32> to vector<8x1xi32>
    %3 = vector.broadcast %2 : vector<8x1xi32> to vector<8x256xi32>
    %4 = arith.cmpi eq, %1, %3 : vector<8x256xi32>
    %5 = vector.extract_strided_slice %0 {offsets = [0, 1], sizes = [8, 1], strides = [1, 1]} : vector<8x8xi32> to vector<8x1xi32>
    %6 = vector.broadcast %5 : vector<8x1xi32> to vector<8x256xi32>
    %7 = arith.cmpi eq, %1, %6 : vector<8x256xi32>
    %8 = arith.ori %4, %7 : vector<8x256xi1>
    %9 = vector.extract_strided_slice %0 {offsets = [0, 2], sizes = [8, 1], strides = [1, 1]} : vector<8x8xi32> to vector<8x1xi32>
    %10 = vector.broadcast %9 : vector<8x1xi32> to vector<8x256xi32>
    %11 = arith.cmpi eq, %1, %10 : vector<8x256xi32>
    %12 = arith.ori %8, %11 : vector<8x256xi1>
    %13 = vector.extract_strided_slice %0 {offsets = [0, 3], sizes = [8, 1], strides = [1, 1]} : vector<8x8xi32> to vector<8x1xi32>
    %14 = vector.broadcast %13 : vector<8x1xi32> to vector<8x256xi32>
    %15 = arith.cmpi eq, %1, %14 : vector<8x256xi32>
    %16 = arith.ori %12, %15 : vector<8x256xi1>
    %17 = vector.extract_strided_slice %0 {offsets = [0, 4], sizes = [8, 1], strides = [1, 1]} : vector<8x8xi32> to vector<8x1xi32>
    %18 = vector.broadcast %17 : vector<8x1xi32> to vector<8x256xi32>
    %19 = arith.cmpi eq, %1, %18 : vector<8x256xi32>
    %20 = arith.ori %16, %19 : vector<8x256xi1>
    %21 = vector.extract_strided_slice %0 {offsets = [0, 5], sizes = [8, 1], strides = [1, 1]} : vector<8x8xi32> to vector<8x1xi32>
    %22 = vector.broadcast %21 : vector<8x1xi32> to vector<8x256xi32>
    %23 = arith.cmpi eq, %1, %22 : vector<8x256xi32>
    %24 = arith.ori %20, %23 : vector<8x256xi1>
    %25 = vector.extract_strided_slice %0 {offsets = [0, 6], sizes = [8, 1], strides = [1, 1]} : vector<8x8xi32> to vector<8x1xi32>
    %26 = vector.broadcast %25 : vector<8x1xi32> to vector<8x256xi32>
    %27 = arith.cmpi eq, %1, %26 : vector<8x256xi32>
    %28 = arith.ori %24, %27 : vector<8x256xi1>
    %29 = vector.extract_strided_slice %0 {offsets = [0, 7], sizes = [8, 1], strides = [1, 1]} : vector<8x8xi32> to vector<8x1xi32>
    %30 = vector.broadcast %29 : vector<8x1xi32> to vector<8x256xi32>
    %31 = arith.cmpi eq, %1, %30 : vector<8x256xi32>
    %32 = arith.ori %28, %31 : vector<8x256xi1>
    %33 = arith.extui %32 : vector<8x256xi1> to vector<8x256xi32>
    %34 = arith.sitofp %33 : vector<8x256xi32> to vector<8x256xf32>
    %c0_1 = arith.constant 0 : index
    %c0_2 = arith.constant 0 : index
    %35 = vector.load %arg2[%c0_1, %c0_2] : memref<256x128xf32, #tpu.memory_space<vmem>>, vector<256x128xf32>
    %cst = arith.constant dense<0.000000e+00> : vector<8x128xf32>
    %36 = tpu.matmul %34, %35, %cst {dimension_numbers = #tpu.dot_dimension_numbers<[1], [0], [0], [1], [0, 0, 1, 1], [], []>} : vector<8x256xf32>, vector<256x128xf32>, vector<8x128xf32> -> vector<8x128xf32>
    %c0_3 = arith.constant 0 : index
    %c0_4 = arith.constant 0 : index
    %37 = vector.load %arg3[%c0_3, %c0_4] : memref<8x128xf32, #tpu.memory_space<vmem>>, vector<8x128xf32>
    tpu.vector_store %arg3[%c0_3, %c0_4], %36 {strides = array<i32>} : memref<8x128xf32, #tpu.memory_space<vmem>>, vector<8x128xf32>,
    return
  }
  func.func @transform_0(%arg0: i32) -> (i32, i32) {
    %c0_i32 = arith.constant 0 : i32
    %c0_i32_0 = arith.constant 0 : i32
    return %arg0, %c0_i32 : i32, i32
  }
  func.func @transform_1(%arg0: i32) -> (i32, i32) {
    %c0_i32 = arith.constant 0 : i32
    %c0_i32_0 = arith.constant 0 : i32
    %c0_i32_1 = arith.constant 0 : i32
    return %c0_i32, %c0_i32_0 : i32, i32
  }
  func.func @transform_2(%arg0: i32) -> (i32, i32) {
    %c0_i32 = arith.constant 0 : i32
    %c0_i32_0 = arith.constant 0 : i32
    return %arg0, %c0_i32 : i32, i32
  }
}

</mosaic_0001>

<llo_original>
// kernel: user_forward.1
$region0: #{user_forward.1}
  #allocation0 [shape = 'u32[]', space=smem, size = 0x4, offset = 0x4, fixed_abs, tag = 'smem constant byte address 0x4 - core index']
  #allocation1 [shape = 'u32[72,128]{1,0:T(1,128)}', space=vmem, size = 0x9000, scoped, tag = 'internal scratch']
  %s0 = inlined_call_operand.vmem [shape: s32[8,8], index: 0, kind: input, shape index: {}]
  %s1 = inlined_call_operand.hbm [shape: f32[256,128], index: 1, kind: input, shape index: {}]
  %s2 = inlined_call_operand.vmem [shape: f32[8,128], index: 2, kind: output, shape index: {}]
  %s3 = sld [smem:[#allocation0]]
  $region22: #{user_forward.1} parent=0
    _
  %s5 = ssub.s32 1, %s3
  %s6 = scalar_select 0, %s5, %s3
  $region1: #{user_forward.1} parent=0
    #allocation2 [shape = 'u8[131072]{0}', space=vmem, size = 0x20000, scoped, tag = 'input window, operand 1, single buffered']
    #allocation3 [shape = 's32[1]{0}', space=sflag, size = 0x4, scoped, tag = 'scoped memory for user_forward.1']
    %7 = vsyncpa [#allocation3], 0
    // Predicated region
    $region2: #{user_forward.1} parent=1 // pred_check
      _
    $region3: #{user_forward.1} parent=1 // pred_check_branch
      %9 = sbr.rel (0) target = $region5
    $region4: #{user_forward.1} parent=1 // pred_region
      _
    $region5: #{user_forward.1} parent=1 // pred_fallthru
      _
    // Predicated region
    $region6: #{user_forward.1} parent=1 // pred_check
      _
    $region7: #{user_forward.1} parent=1 // pred_check_branch
      %11 = sbr.rel (0) target = $region9
    $region8: #{user_forward.1} parent=1 // pred_region
      %13 = vsyncadd [#allocation3], 0
      %s14 = sshll.u32 %s1, 4
      %s15 = int_to_ptr.hbm [resolvable:$true] %s14
      %s16 = sshll.u32 [#allocation2], 4
      %s17 = int_to_ptr.vmem [resolvable:$true] %s16
      %22 = dma.hbm_to_vmem [thread:$0]  %s15, 4096, %s17, [#allocation3], 128, 128, 8
    $region9: #{user_forward.1} parent=1 // pred_fallthru
      _
    // Predicated region
    $region10: #{user_forward.1} parent=1 // pred_check
      _
    $region11: #{user_forward.1} parent=1 // pred_check_branch
      %24 = sbr.rel (0) target = $region13
    $region12: #{user_forward.1} parent=1 // pred_region
      %26 = dma.done [#allocation3], 4096
    $region13: #{user_forward.1} parent=1 // pred_fallthru
      _
    %v27 = vld [vmem:[%s0] sm:$0xff]
    %v28 = vlaneseq
    %v29 = vand.u32 %v28, 127
    %v30 = vadd.s32 %v29, 128
    %31 = vset.pattern.permute.xlu0 0
    %32 = vperm.xlu0 %31, %v27
    %v33 = vpop.permute.xlu0 %32
    %vm34 = vcmp.eq.s32.totalorder %v29, %v33
    %vm35 = vcmp.eq.s32.totalorder %v30, %v33
    %36 = vset.pattern.permute.xlu0 1
    %37 = vperm.xlu0 %36, %v27
    %v38 = vpop.permute.xlu0 %37
    %vm39 = vcmp.eq.s32.totalorder %v29, %v38
    %vm40 = vcmp.eq.s32.totalorder %v30, %v38
    %vm41 = vmor %vm34, %vm39
    %vm42 = vmor %vm35, %vm40
    %43 = vset.pattern.permute.xlu0 2
    %44 = vperm.xlu0 %43, %v27
    %v45 = vpop.permute.xlu0 %44
    %vm46 = vcmp.eq.s32.totalorder %v29, %v45
    %vm47 = vcmp.eq.s32.totalorder %v30, %v45
    %vm48 = vmor %vm41, %vm46
    %vm49 = vmor %vm42, %vm47
    %50 = vset.pattern.permute.xlu0 3
    %51 = vperm.xlu0 %50, %v27
    %v52 = vpop.permute.xlu0 %51
    %vm53 = vcmp.eq.s32.totalorder %v29, %v52
    %vm54 = vcmp.eq.s32.totalorder %v30, %v52
    %vm55 = vmor %vm48, %vm53
    %vm56 = vmor %vm49, %vm54
    %57 = vset.pattern.permute.xlu0 4
    %58 = vperm.xlu0 %57, %v27
    %v59 = vpop.permute.xlu0 %58
    %vm60 = vcmp.eq.s32.totalorder %v29, %v59
    %vm61 = vcmp.eq.s32.totalorder %v30, %v59
    %vm62 = vmor %vm55, %vm60
    %vm63 = vmor %vm56, %vm61
    %64 = vset.pattern.permute.xlu0 5
    %65 = vperm.xlu0 %64, %v27
    %v66 = vpop.permute.xlu0 %65
    %vm67 = vcmp.eq.s32.totalorder %v29, %v66
    %vm68 = vcmp.eq.s32.totalorder %v30, %v66
    %vm69 = vmor %vm62, %vm67
    %vm70 = vmor %vm63, %vm68
    %71 = vset.pattern.permute.xlu0 6
    %72 = vperm.xlu0 %71, %v27
    %v73 = vpop.permute.xlu0 %72
    %vm74 = vcmp.eq.s32.totalorder %v29, %v73
    %vm75 = vcmp.eq.s32.totalorder %v30, %v73
    %vm76 = vmor %vm69, %vm74
    %vm77 = vmor %vm70, %vm75
    %78 = vset.pattern.permute.xlu0 7
    %79 = vperm.xlu0 %78, %v27
    %v80 = vpop.permute.xlu0 %79
    %vm81 = vcmp.eq.s32.totalorder %v29, %v80
    %vm82 = vcmp.eq.s32.totalorder %v30, %v80
    %vm83 = vmor %vm76, %vm81
    %vm84 = vmor %vm77, %vm82
    %v85 = vsel %vm83, 1, 0
    %v86 = vsel %vm84, 1, 0
    %v87 = vcvt.s32.f32 %v85
    %v88 = vcvt.s32.f32 %v86
    %v89 = vld [vmem:[#allocation2] sm:$0xff]
    %v90 = vld [vmem:[#allocation2 + $0x8] sm:$0xff]
    %v91 = vld [vmem:[#allocation2 + $0x10] sm:$0xff]
    %v92 = vld [vmem:[#allocation2 + $0x18] sm:$0xff]
    %v93 = vld [vmem:[#allocation2 + $0x20] sm:$0xff]
    %v94 = vld [vmem:[#allocation2 + $0x28] sm:$0xff]
    %v95 = vld [vmem:[#allocation2 + $0x30] sm:$0xff]
    %v96 = vld [vmem:[#allocation2 + $0x38] sm:$0xff]
    %v97 = vld [vmem:[#allocation2 + $0x40] sm:$0xff]
    %v98 = vld [vmem:[#allocation2 + $0x48] sm:$0xff]
    %v99 = vld [vmem:[#allocation2 + $0x50] sm:$0xff]
    %v100 = vld [vmem:[#allocation2 + $0x58] sm:$0xff]
    %v101 = vld [vmem:[#allocation2 + $0x60] sm:$0xff]
    %v102 = vld [vmem:[#allocation2 + $0x68] sm:$0xff]
    %v103 = vld [vmem:[#allocation2 + $0x70] sm:$0xff]
    %v104 = vld [vmem:[#allocation2 + $0x78] sm:$0xff]
    %v105 = vld [vmem:[#allocation2 + $0x80] sm:$0xff]
    %v106 = vld [vmem:[#allocation2 + $0x88] sm:$0xff]
    %v107 = vld [vmem:[#allocation2 + $0x90] sm:$0xff]
    %v108 = vld [vmem:[#allocation2 + $0x98] sm:$0xff]
    %v109 = vld [vmem:[#allocation2 + $0xa0] sm:$0xff]
    %v110 = vld [vmem:[#allocation2 + $0xa8] sm:$0xff]
    %v111 = vld [vmem:[#allocation2 + $0xb0] sm:$0xff]
    %v112 = vld [vmem:[#allocation2 + $0xb8] sm:$0xff]
    %v113 = vld [vmem:[#allocation2 + $0xc0] sm:$0xff]
    %v114 = vld [vmem:[#allocation2 + $0xc8] sm:$0xff]
    %v115 = vld [vmem:[#allocation2 + $0xd0] sm:$0xff]
    %v116 = vld [vmem:[#allocation2 + $0xd8] sm:$0xff]
    %v117 = vld [vmem:[#allocation2 + $0xe0] sm:$0xff]
    %v118 = vld [vmem:[#allocation2 + $0xe8] sm:$0xff]
    %v119 = vld [vmem:[#allocation2 + $0xf0] sm:$0xff]
    %v120 = vld [vmem:[#allocation2 + $0xf8] sm:$0xff]
    %121 = vmatpush.msra.mxu0 %v104
    %122 = vmatpush.msra.mxu0 %v103
    %123 = vmatpush.msra.mxu0 %v102
    %124 = vmatpush.msra.mxu0 %v101
    %125 = vmatpush.msra.mxu0 %v100
    %126 = vmatpush.msra.mxu0 %v99
    %127 = vmatpush.msra.mxu0 %v98
    %128 = vmatpush.msra.mxu0 %v97
    %129 = vmatpush.msra.mxu0 %v96
    %130 = vmatpush.msra.mxu0 %v95
    %131 = vmatpush.msra.mxu0 %v94
    %132 = vmatpush.msra.mxu0 %v93
    %133 = vmatpush.msra.mxu0 %v92
    %134 = vmatpush.msra.mxu0 %v91
    %135 = vmatpush.msra.mxu0 %v90
    %136 = vmatpush.msra.mxu0 %v89
    %137 = vmatmul.f32.gmra.mxu0 %v87
    %v138 = vpop.f32.mrf.mxu0
    %v139 = vadd.f32 0.0, %v138
    %140 = vdwg.mxu0
    %141 = vmatpush.msra.mxu0 %v120
    %142 = vmatpush.msra.mxu0 %v119
    %143 = vmatpush.msra.mxu0 %v118
    %144 = vmatpush.msra.mxu0 %v117
    %145 = vmatpush.msra.mxu0 %v116
    %146 = vmatpush.msra.mxu0 %v115
    %147 = vmatpush.msra.mxu0 %v114
    %148 = vmatpush.msra.mxu0 %v113
    %149 = vmatpush.msra.mxu0 %v112
    %150 = vmatpush.msra.mxu0 %v111
    %151 = vmatpush.msra.mxu0 %v110
    %152 = vmatpush.msra.mxu0 %v109
    %153 = vmatpush.msra.mxu0 %v108
    %154 = vmatpush.msra.mxu0 %v107
    %155 = vmatpush.msra.mxu0 %v106
    %156 = vmatpush.msra.mxu0 %v105
    %157 = vmatmul.f32.gmra.mxu0 %v88
    %v158 = vpop.f32.mrf.mxu0
    %v159 = vadd.f32 %v139, %v158
    %160 = vdwg.mxu0
    %161 = vst [vmem:[%s2] sm:$0xff] %v159
    // Predicated region
    $region14: #{user_forward.1} parent=1 // pred_check
      _
    $region15: #{user_forward.1} parent=1 // pred_check_branch
      %163 = sbr.rel (0) target = $region17
    $region16: #{user_forward.1} parent=1 // pred_region
      _
    $region17: #{user_forward.1} parent=1 // pred_fallthru
      _
    // Predicated region
    $region18: #{user_forward.1} parent=1 // pred_check
      _
    $region19: #{user_forward.1} parent=1 // pred_check_branch
      %165 = sbr.rel (0) target = $region21
    $region20: #{user_forward.1} parent=1 // pred_region
      _
    $region21: #{user_forward.1} parent=1 // pred_fallthru
      _
    %166 = vsyncpa [#allocation3], 1

</llo_original>
